<compile_context>
chip_gen: v6e
topology: v6e:2x2x1
jax: 0.10.0
libtpu: 0.0.40
codegen_flags: <defaults>
</compile_context>

<pallas_src>
import functools

import jax
import jax.numpy as jnp
from jax.experimental import pallas as pl
from jax.experimental.pallas import tpu as pltpu

_NUM_CORES = 2  # leading "parallel" grid axis: sharded across TensorCores on
                # v7x, a cheap outer loop on single-TC v5e/v6e.


def _source_discrim_loss_kernel(x_ref, o_ref, acc_ref, *,
                                num_classes: int, batch_size: int,
                                block_b: int, blocks_per_core: int):
    core = pl.program_id(0)      # "parallel" axis: per-core partial sum
    j = pl.program_id(1)         # "arbitrary" axis carrying the accumulator

    @pl.when(j == 0)
    def _init():
        acc_ref[...] = jnp.zeros_like(acc_ref)

    x = x_ref[...].astype(jnp.float32)                        # (TB, C)
    C = x.shape[1]

    # Row-wise numerically-stable folded softmax. Masked/total exp sums are
    # formed via static lane slices; the probability matrix never exists.
    m = jnp.max(x, axis=1, keepdims=True)                     # (TB, 1)
    e = jnp.exp(x - m)                                        # (TB, C)
    if num_classes < C:
        num = jnp.sum(e[:, :num_classes], axis=1, keepdims=True)    # (TB, 1)
        rest = jnp.sum(e[:, num_classes:], axis=1, keepdims=True)   # (TB, 1)
        denom = num + rest
    else:
        num = jnp.sum(e, axis=1, keepdims=True)
        denom = num

    # log(s) = log(num) - log(denom); 1e-6 guard exactly where the masked
    # prob-sum underflowed to zero (matches the PyTorch soft_weight branch).
    log_s = jnp.where(num == 0.0,
                      jnp.log(jnp.float32(1e-6)),
                      jnp.log(num) - jnp.log(denom))          # (TB, 1)

    # Mask rows past the true batch size. The global row index uses the
    # *unclamped* block index, so the partial tail block (unspecified data)
    # and any duplicated clamped block contribute exactly zero.
    blk = core * blocks_per_core + j
    row = blk * block_b + jax.lax.broadcasted_iota(jnp.int32, log_s.shape, 0)
    contrib = jnp.where(row < batch_size, log_s, 0.0)         # (TB, 1)
    acc_ref[...] += jnp.sum(contrib, axis=(0, 1), keepdims=True)

    @pl.when(j == pl.num_programs(1) - 1)
    def _finalize():
        o_ref[...] = acc_ref[...].reshape(o_ref.shape)


def source_discrim_loss(x: jax.Array, num_classes: int = 31, *,
                        block_b: int | None = None,
                        vmem_buffer_budget_bytes: int = 4 * 1024 * 1024) -> jax.Array:
    """Pallas implementation of SourceDiscrimLoss.forward. x: (B, C) logits."""
    B, C = x.shape
    in_bytes = x.dtype.itemsize
    sub = max(8, 32 // in_bytes)   # sublane multiple: 8 (f32), 16 (bf16), 32 (int8)

    # Batch tile: ~vmem_buffer_budget_bytes per pipeline buffer (double-buffered
    # input plus f32 in-kernel intermediates stays well under the 48 MiB scoped
    # VMEM limit set below on every chip generation).
    if block_b is None:
        tb = vmem_buffer_budget_bytes // (C * in_bytes)
        tb = int(max(sub, min(tb, 32768)))
    else:
        tb = int(max(sub, block_b))
    tb -= tb % sub
    if B <= tb:
        tb = B                     # single block: block dim == full dim

    num_blocks = pl.cdiv(B, tb)
    blocks_per_core = pl.cdiv(num_blocks, _NUM_CORES)

    def x_index_map(core, j):
        # Clamp so the DMA never indexes past the array; over-range blocks are
        # fully masked in-kernel via the unclamped row index.
        return (jnp.minimum(core * blocks_per_core + j, num_blocks - 1), 0)

    kernel = functools.partial(
        _source_discrim_loss_kernel,
        num_classes=num_classes, batch_size=B,
        block_b=tb, blocks_per_core=blocks_per_core)

    cost = pl.CostEstimate(
        flops=5 * B * C,
        transcendentals=B * C + 2 * B,     # exp per element, 2 logs per row
        bytes_accessed=B * C * in_bytes + _NUM_CORES * 4)

    partials = pl.pallas_call(
        kernel,
        out_shape=jax.ShapeDtypeStruct((_NUM_CORES, 1, 1), jnp.float32),
        grid=(_NUM_CORES, blocks_per_core),
        in_specs=[pl.BlockSpec((tb, C), x_index_map)],
        out_specs=pl.BlockSpec((1, 1, 1), lambda core, j: (core, 0, 0)),
        scratch_shapes=[pltpu.VMEM((1, 1), jnp.float32)],
        compiler_params=pltpu.CompilerParams(
            dimension_semantics=("parallel", "arbitrary"),
            vmem_limit_bytes=48 * 1024 * 1024),
        cost_estimate=cost,
    )(x)

    return -jnp.sum(partials) / jnp.float32(B)


def _reference(x: jax.Array, num_classes: int = 31) -> jax.Array:
    prob = jax.nn.softmax(x.astype(jnp.float32), axis=1)
    s = prob[:, :num_classes].sum(axis=1)
    s = s + jnp.where(s == 0.0, 1e-6, 0.0)
    return -jnp.log(s).mean()


if __name__ == "__main__":
    key = jax.random.PRNGKey(0)
    k0, k1, k2 = jax.random.split(key, 3)
    num_classes = 31
    C = 2 * num_classes                  # source+target logits, classes on dim 1

    # 1) Small single-block case (B == tile, B not required to be 8-aligned).
    x = jax.random.normal(k0, (8, C), dtype=jnp.float32)
    loss = jax.block_until_ready(source_discrim_loss(x, num_classes=num_classes))
    ref = _reference(x, num_classes=num_classes)
    assert jnp.allclose(loss, ref, rtol=1e-5, atol=1e-5), (loss, ref)

    # 2) Multi-tile path: B=100 (not a multiple of the tile), forced small tile
    #    to exercise the 2-core split, partial tail block, clamped index_map
    #    and carried accumulator -- all without any wrapper-side padding.
    x2 = jax.random.normal(k1, (100, C), dtype=jnp.float32)
    loss2 = jax.block_until_ready(
        source_discrim_loss(x2, num_classes=num_classes, block_b=16))
    ref2 = _reference(x2, num_classes=num_classes)
    assert jnp.allclose(loss2, ref2, rtol=1e-5, atol=1e-5), (loss2, ref2)

    # 3) bf16 logits accepted directly (in-kernel f32 upcast).
    x3 = jax.random.normal(k2, (8, C), dtype=jnp.float32).astype(jnp.bfloat16)
    loss3 = jax.block_until_ready(source_discrim_loss(x3, num_classes=num_classes))
    ref3 = _reference(x3.astype(jnp.float32), num_classes=num_classes)
    assert jnp.allclose(loss3, ref3, rtol=1e-5, atol=1e-5), (loss3, ref3)

    print("KERNEL_OK")
</pallas_src>

<mosaic_0001>
module attributes {stable_mosaic.version = 11 : i64} {
  func.func @_source_discrim_loss_kernel(%arg0: i32, %arg1: i32, %arg2: memref<8x62xf32, #tpu.memory_space<vmem>>, %arg3: memref<1x1x1xf32, #tpu.memory_space<vmem>>, %arg4: memref<1x1xf32, #tpu.memory_space<vmem>>) attributes {dimension_semantics = [#tpu.dimension_semantics<parallel>, #tpu.dimension_semantics<arbitrary>], iteration_bounds = array<i64: 2, 1>, scalar_prefetch = 0 : i64, scratch_operands = 1 : i64, tpu.core_type = #tpu.core_type<tc>, window_params = [{transform_indices = @transform_0, window_bounds = array<i64: 8, 62>}, {transform_indices = @transform_1, window_bounds = array<i64: 1, 1, 1>}]} {
    %c0_i32 = arith.constant 0 : i32
    %0 = arith.cmpi eq, %arg1, %c0_i32 : i32
    %1 = arith.extui %0 : i1 to i32
    %c0_i32_0 = arith.constant 0 : i32
    %2 = arith.cmpi ne, %1, %c0_i32_0 : i32
    scf.if %2 {
      %cst_15 = arith.constant 0.000000e+00 : f32
      %45 = vector.broadcast %cst_15 : f32 to vector<1x1xf32>
      %c0_16 = arith.constant 0 : index
      %c0_17 = arith.constant 0 : index
      %46 = vector.load %arg4[%c0_16, %c0_17] : memref<1x1xf32, #tpu.memory_space<vmem>>, vector<1x1xf32>
      tpu.vector_store %arg4[%c0_16, %c0_17], %45 {strides = array<i32>} : memref<1x1xf32, #tpu.memory_space<vmem>>, vector<1x1xf32>,
    } else {
    }
    %c0 = arith.constant 0 : index
    %c0_1 = arith.constant 0 : index
    %3 = vector.load %arg2[%c0, %c0_1] : memref<8x62xf32, #tpu.memory_space<vmem>>, vector<8x62xf32>
    %cst = arith.constant dense<0xFF800000> : vector<8xf32>
    %4 = vector.multi_reduction <maximumf>, %3, %cst [1] : vector<8x62xf32> to vector<8xf32>
    %5 = vector.shape_cast %4 : vector<8xf32> to vector<8x1xf32>
    %6 = vector.broadcast %5 : vector<8x1xf32> to vector<8x62xf32>
    %7 = arith.subf %3, %6 : vector<8x62xf32>
    %8 = math.exp %7 : vector<8x62xf32>
    %9 = vector.extract_strided_slice %8 {offsets = [0, 0], sizes = [8, 31], strides = [1, 1]} : vector<8x62xf32> to vector<8x31xf32>
    %cst_2 = arith.constant dense<0.000000e+00> : vector<8xf32>
    %10 = vector.multi_reduction <add>, %9, %cst_2 [1] : vector<8x31xf32> to vector<8xf32>
    %11 = vector.shape_cast %10 : vector<8xf32> to vector<8x1xf32>
    %12 = vector.extract_strided_slice %8 {offsets = [0, 31], sizes = [8, 31], strides = [1, 1]} : vector<8x62xf32> to vector<8x31xf32>
    %cst_3 = arith.constant dense<0.000000e+00> : vector<8xf32>
    %13 = vector.multi_reduction <add>, %12, %cst_3 [1] : vector<8x31xf32> to vector<8xf32>
    %14 = vector.shape_cast %13 : vector<8xf32> to vector<8x1xf32>
    %15 = arith.addf %11, %14 : vector<8x1xf32>
    %cst_4 = arith.constant 0.000000e+00 : f32
    %16 = vector.broadcast %cst_4 : f32 to vector<8x1xf32>
    %17 = arith.cmpf oeq, %11, %16 : vector<8x1xf32>
    %cst_5 = arith.constant 9.99999997E-7 : f32
    %18 = math.log %cst_5 : f32
    %19 = math.log %11 : vector<8x1xf32>
    %20 = math.log %15 : vector<8x1xf32>
    %21 = arith.subf %19, %20 : vector<8x1xf32>
    %22 = vector.broadcast %18 : f32 to vector<8x1xf32>
    %23 = arith.select %17, %22, %21 : vector<8x1xi1>, vector<8x1xf32>
    %c1_i32 = arith.constant 1 : i32
    %24 = arith.muli %arg0, %c1_i32 : i32
    %25 = arith.addi %24, %arg1 : i32
    %c8_i32 = arith.constant 8 : i32
    %26 = arith.muli %25, %c8_i32 : i32
    %27 = tpu.iota {dimensions = array<i32: 0>} : vector<8x1xi32>
    %28 = vector.broadcast %26 : i32 to vector<8x1xi32>
    %29 = arith.addi %28, %27 : vector<8x1xi32>
    %c8_i32_6 = arith.constant 8 : i32
    %30 = vector.broadcast %c8_i32_6 : i32 to vector<8x1xi32>
    %31 = arith.cmpi slt, %29, %30 : vector<8x1xi32>
    %cst_7 = arith.constant 0.000000e+00 : f32
    %32 = vector.broadcast %cst_7 : f32 to vector<8x1xf32>
    %33 = arith.select %31, %23, %32 : vector<8x1xi1>, vector<8x1xf32>
    %c0_8 = arith.constant 0 : index
    %c0_9 = arith.constant 0 : index
    %34 = vector.load %arg4[%c0_8, %c0_9] : memref<1x1xf32, #tpu.memory_space<vmem>>, vector<1x1xf32>
    %35 = vector.shape_cast %33 : vector<8x1xf32> to vector<1x8x1xf32>
    %cst_10 = arith.constant dense<0.000000e+00> : vector<1xf32>
    %36 = vector.multi_reduction <add>, %35, %cst_10 [1, 2] : vector<1x8x1xf32> to vector<1xf32>
    %37 = vector.shape_cast %36 : vector<1xf32> to vector<1x1x1xf32>
    %38 = vector.extract %37[0, 0, 0] : f32 from vector<1x1x1xf32>
    %39 = vector.broadcast %38 : f32 to vector<1x1xf32>
    %40 = arith.addf %34, %39 : vector<1x1xf32>
    %c0_11 = arith.constant 0 : index
    %c0_12 = arith.constant 0 : index
    %41 = vector.load %arg4[%c0_11, %c0_12] : memref<1x1xf32, #tpu.memory_space<vmem>>, vector<1x1xf32>
    tpu.vector_store %arg4[%c0_11, %c0_12], %40 {strides = array<i32>} : memref<1x1xf32, #tpu.memory_space<vmem>>, vector<1x1xf32>,
    %c0_i32_13 = arith.constant 0 : i32
    %42 = arith.cmpi eq, %arg1, %c0_i32_13 : i32
    %43 = arith.extui %42 : i1 to i32
    %c0_i32_14 = arith.constant 0 : i32
    %44 = arith.cmpi ne, %43, %c0_i32_14 : i32
    scf.if %44 {
      %c0_15 = arith.constant 0 : index
      %c0_16 = arith.constant 0 : index
      %45 = vector.load %arg4[%c0_15, %c0_16] : memref<1x1xf32, #tpu.memory_space<vmem>>, vector<1x1xf32>
      %46 = vector.shape_cast %45 : vector<1x1xf32> to vector<1x1x1xf32>
      %c0_17 = arith.constant 0 : index
      %c0_18 = arith.constant 0 : index
      %c0_19 = arith.constant 0 : index
      %47 = vector.load %arg3[%c0_17, %c0_18, %c0_19] : memref<1x1x1xf32, #tpu.memory_space<vmem>>, vector<1x1x1xf32>
      tpu.vector_store %arg3[%c0_17, %c0_18, %c0_19], %46 {strides = array<i32>} : memref<1x1x1xf32, #tpu.memory_space<vmem>>, vector<1x1x1xf32>,
    } else {
    }
    return
  }
  func.func @transform_0(%arg0: i32, %arg1: i32) -> (i32, i32) {
    %c1_i32 = arith.constant 1 : i32
    %0 = arith.muli %arg0, %c1_i32 : i32
    %1 = arith.addi %0, %arg1 : i32
    %c0_i32 = arith.constant 0 : i32
    %2 = arith.minsi %1, %c0_i32 : i32
    %c0_i32_0 = arith.constant 0 : i32
    %c0_i32_1 = arith.constant 0 : i32
    return %2, %c0_i32_0 : i32, i32
  }
  func.func @transform_1(%arg0: i32, %arg1: i32) -> (i32, i32, i32) {
    %c0_i32 = arith.constant 0 : i32
    %c0_i32_0 = arith.constant 0 : i32
    %c0_i32_1 = arith.constant 0 : i32
    return %arg0, %c0_i32, %c0_i32_0 : i32, i32, i32
  }
}

</mosaic_0001>

<llo_original>
// kernel: tpu_custom_call.1
$region0: #{tpu_custom_call.1}
  #allocation0 [shape = 'u32[]', space=smem, size = 0x4, offset = 0x4, fixed_abs, tag = 'smem constant byte address 0x4 - core index']
  #allocation1 [shape = 'u32[144,128]{1,0:T(1,128)}', space=vmem, size = 0x12000, scoped, tag = 'internal scratch']
  #allocation2 [shape = 'f32[1,1]{1,0:T(1,128)}', space=vmem, size = 0x200, scoped, tag = 'scratch operand']
  %s0 = inlined_call_operand.hbm [shape: f32[8,62], index: 0, kind: input, shape index: {}]
  %s1 = inlined_call_operand.vmem [shape: f32[2,1,1], index: 1, kind: output, shape index: {}]
  %s2 = sld [smem:[#allocation0]]
  $region49: #{tpu_custom_call.1} parent=0
    _
  %s4 = ssub.s32 1, %s2
  %s5 = scalar_select 0, %s4, %s2
  $region1: #{tpu_custom_call.1} parent=0
    #allocation3 [shape = 'u8[8192]{0}', space=vmem, size = 0x2000, scoped, tag = 'input window, operand 0']
    #allocation4 [shape = 's32[2]{0}', space=sflag, size = 0x8, scoped, tag = 'scoped memory for tpu_custom_call.1']
    %6 = vsyncpa [#allocation4], 0
    %s7 = scalar_lea.sflag [#allocation4], 1
    %8 = vsyncpa %s7, 0
    loop: start=0, step=1, limit=4
    $region2: #{tpu_custom_call.1} parent=1 // loop_pre_header
      _
    $region3: #{tpu_custom_call.1} parent=1 // loop_header
      %s10 = sphi 0, %s14
      %p11 = scmp.ge.s32.totalorder %s10, 4
      %s17 = sphi 0, %s29
      %s18 = sphi 0, %s25
      %s19 = sphi 0, %s17
      %s20 = sphi 0, %s18
      %s21 = sphi 0, %s19
      %s22 = sphi 0, %s20
      %s38 = sphi 0, %s40
      %s41 = sphi 0, %s38
      %s42 = sphi 0, %s41
      %s58 = sphi 0, %s42
      %s64 = sphi 0, %s66
      %s67 = sphi 0, %s64
      %s68 = sphi 0, %s67
      %s84 = sphi 0, %s68
    $region4: #{tpu_custom_call.1} parent=1 // loop_header_branch
      %13 = sbr.rel (%p11) target = $region8
    $region5: #{tpu_custom_call.1} parent=1 // loop_body
      %s15 = ssub.s32 %s10, 1
      %s16 = ssub.s32 %s10, 2
      %s23 = sadd.s32 1, %s18
      %p24 = scmp.ge.s32.totalorder %s23, 1
      %s25 = scalar_select %p24, 0, %s23
      %s26 = sadd.s32 1, %s17
      %s27 = scalar_select %p24, %s26, %s17
      %p28 = scmp.ge.s32.totalorder %s27, 2
      %s29 = scalar_select %p28, 0, %s27
      %s30 = sadd.s32 %s17, %s18
      %p31 = scmp.lt.s32.totalorder %s30, 0
      %s32 = scalar_select %p31, %s30, 0
      %s33 = sadd.s32 %s29, %s25
      %p34 = scmp.lt.s32.totalorder %s33, 0
      %s35 = scalar_select %p34, %s33, 0
      %s36 = ssub.s32 %s32, %s35
      %p37 = scmp.eq.s32.totalorder %s36, 0
      %s39 = sadd.s32 %s38, 1
      %s40 = scalar_select %p37, %s38, %s39
      %p43 = pneg %p37
      %p44 = scmp.eq.s32.totalorder %s10, 1
      %p45 = por %p43, %p44
      %p46 = scmp.ne.s32.totalorder %s38, %s41
      %p47 = scmp.eq.s32.totalorder %s10, 0
      %p48 = por %p46, %p47
      %p49 = scmp.ne.s32.totalorder %s38, %s41
      %p50 = scmp.eq.s32.totalorder %s15, 1
      %p51 = por %p49, %p50
      %p52 = scmp.ne.s32.totalorder %s41, %s42
      %p53 = scmp.eq.s32.totalorder %s15, 0
      %p54 = por %p52, %p53
      %p55 = scmp.ne.s32.totalorder %s41, %s42
      %p56 = scmp.eq.s32.totalorder %s16, 1
      %p57 = por %p55, %p56
      %p59 = scmp.ne.s32.totalorder %s42, %s58
      %p60 = scmp.eq.s32.totalorder %s16, 0
      %p61 = por %p59, %p60
      %s62 = ssub.s32 %s17, %s29
      %p63 = scmp.eq.s32.totalorder %s62, 0
      %s65 = sadd.s32 %s64, 1
      %s66 = scalar_select %p63, %s64, %s65
      %p69 = pneg %p63
      %p70 = scmp.eq.s32.totalorder %s10, 1
      %p71 = por %p69, %p70
      %p72 = scmp.ne.s32.totalorder %s64, %s67
      %p73 = scmp.eq.s32.totalorder %s10, 0
      %p74 = por %p72, %p73
      %p75 = scmp.ne.s32.totalorder %s64, %s67
      %p76 = scmp.eq.s32.totalorder %s15, 1
      %p77 = por %p75, %p76
      %p78 = scmp.ne.s32.totalorder %s67, %s68
      %p79 = scmp.eq.s32.totalorder %s15, 0
      %p80 = por %p78, %p79
      %p81 = scmp.ne.s32.totalorder %s67, %s68
      %p82 = scmp.eq.s32.totalorder %s16, 1
      %p83 = por %p81, %p82
      %p85 = scmp.ne.s32.totalorder %s68, %s84
      %p86 = scmp.eq.s32.totalorder %s16, 0
      %p87 = por %p85, %p86
      %p88 = scmp.le.s32.totalorder 1, %s10
      %p89 = scmp.lt.s32.totalorder %s10, 3
      %p90 = pnand %p88, %p89
      %p91 = pneg %p90
      // Predicated region
      $region9: #{tpu_custom_call.1} parent=5 // pred_check
        _
      $region10: #{tpu_custom_call.1} parent=5 // pred_check_branch
        %93 = sbr.rel (%p90) target = $region12
      $region11: #{tpu_custom_call.1} parent=5 // pred_region
        %s94 = ssub.s32 %s10, 1
      $region12: #{tpu_custom_call.1} parent=5 // pred_fallthru
        _
      %p95 = scmp.lt.s32.totalorder %s10, 2
      // Predicated region
      $region13: #{tpu_custom_call.1} parent=5 // pred_check
        %p96 = pneg %p95
      $region14: #{tpu_custom_call.1} parent=5 // pred_check_branch
        %98 = sbr.rel (%p96) target = $region16
      $region15: #{tpu_custom_call.1} parent=5 // pred_region
        // Predicated region
        $region17: #{tpu_custom_call.1} parent=15 // pred_check
          %p99 = pneg %p48
        $region18: #{tpu_custom_call.1} parent=15 // pred_check_branch
          %101 = sbr.rel (%p99) target = $region20
        $region19: #{tpu_custom_call.1} parent=15 // pred_region
          %s102 = sand.u32 %s38, 1
          %s103 = scalar_lea.sflag [#allocation4], %s102
          %s104 = sand.u32 %s38, 1
          %s105 = smul.addr %s104, 8
          %s106 = scalar_lea.vmem [#allocation3], %s105
          %s107 = sadd.s32 %s17, %s18
          %p108 = scmp.lt.s32.totalorder %s107, 0
          %s109 = scalar_select %p108, %s107, 0
          %s111 = ssub.s32 128, 128
          %112 = vsyncadd %s103, %s111
          %s113 = smul.addr %s109, 128
          %s114 = scalar_lea.hbm %s0, %s113
          %s116 = sshll.u32 %s106, 4
          %s117 = int_to_ptr.vmem [resolvable:$true] %s116
          %119 = dma.hbm_to_vmem [thread:$0]  %s114, 128, %s117, %s103
        $region20: #{tpu_custom_call.1} parent=15 // pred_fallthru
          _
      $region16: #{tpu_custom_call.1} parent=5 // pred_fallthru
        _
      %p120 = scmp.le.s32.totalorder 1, %s10
      %p121 = scmp.lt.s32.totalorder %s10, 3
      %p122 = pnand %p120, %p121
      %p123 = pneg %p122
      // Predicated region
      $region21: #{tpu_custom_call.1} parent=5 // pred_check
        _
      $region22: #{tpu_custom_call.1} parent=5 // pred_check_branch
        %125 = sbr.rel (%p122) target = $region24
      $region23: #{tpu_custom_call.1} parent=5 // pred_region
        %s126 = ssub.s32 %s10, 1
        %s127 = sand.u32 %s41, 1
        %s128 = scalar_lea.sflag [#allocation4], %s127
        %s129 = sand.u32 %s41, 1
        %s130 = smul.addr %s129, 8
        %s131 = scalar_lea.vmem [#allocation3], %s130
        // Predicated region
        $region25: #{tpu_custom_call.1} parent=23 // pred_check
          %p132 = pneg %p54
        $region26: #{tpu_custom_call.1} parent=23 // pred_check_branch
          %134 = sbr.rel (%p132) target = $region28
        $region27: #{tpu_custom_call.1} parent=23 // pred_region
          %135 = dma.done %s128, 128
        $region28: #{tpu_custom_call.1} parent=23 // pred_fallthru
          _
        %s136 = sand.u32 %s41, 1
        %s137 = scalar_lea.sflag [#allocation4], %s136
        %s138 = sand.u32 %s41, 1
        %s139 = smul.addr %s138, 8
        %s140 = scalar_lea.vmem [#allocation3], %s139
        %p141 = pneg %p54
        %p142 = pneg %p51
        %p143 = pneg %p80
        %p144 = pneg %p77
        %p145 = scmp.lt.s32.totalorder %s19, 1
        %s146 = scalar_select %p145, %s19, 1
        %s147 = scalar_lea.vmem %s1, %s146
        %s148 = sadd.s32 %s19, %s20
        %p149 = scmp.lt.s32.totalorder %s148, 0
        %s150 = scalar_select %p149, %s148, 0
        %p151 = scmp.lt.s32.totalorder %s19, 1
        %s152 = scalar_select %p151, %s19, 1
        %s153 = scalar_lea.vmem %s1, %s152
        %p154 = scmp.eq.s32.totalorder %s20, 0
        // Predicated region
        $region29: #{tpu_custom_call.1} parent=23 // pred_check
          %p155 = pneg %p154
        $region30: #{tpu_custom_call.1} parent=23 // pred_check_branch
          %157 = sbr.rel (%p155) target = $region32
        $region31: #{tpu_custom_call.1} parent=23 // pred_region
          %vm158 = vcmask 0
          %159 = vst.msk [vmem:[#allocation2] sm:$0x1] %vm158, 0.0
        $region32: #{tpu_custom_call.1} parent=23 // pred_fallthru
          _
        %v160 = vld [vmem:[%s131] sm:$0xff]
        %vm161 = vcmask 506880
        %v162 = vsel %vm161, %v160, -inf
        %163 = vmax.xlane.f32.xlu0 %v162
        %v164 = vpop.xlane.xlu0 %163
        %v165 = vsub.f32 %v160, %v164
        %v166 = vmul.f32 %v165, 1.442695
        %v167 = vpow.pop %v166
        %vm168 = vcmask 252928
        %v169 = vsel %vm168, %v167, 0.0
        %170 = vadd.xlane.f32.xlu0 %v169
        %v171 = vpop.xlane.xlu0 %170
        %173 = vrot.lane.b32.xlu0 %v167, 97
        %v174 = vpop.permute.xlu0 %173
        %v176 = vsel %vm168, %v174, 0.0
        %177 = vadd.xlane.f32.xlu0 %v176
        %v178 = vpop.xlane.xlu0 %177
        %v179 = vadd.f32 %v171, %v178
        %vm180 = vcmp.eq.f32.partialorder %v171, 0.0
        %v181 = vlog2.pop %v171
        %v182 = vmul.f32 %v181, 0.6931472
        %v183 = vlog2.pop %v179
        %v184 = vmul.f32 %v183, 0.6931472
        %v185 = vsub.f32 %v182, %v184
        %v186 = vsel %vm180, -13.815511, %v185
        %s187 = sadd.s32 %s19, %s20
        %s188 = smul.u32 %s187, 8
        %v189 = vlaneseq
        %v190 = vshrl.u32 %v189, 7
        %v191 = vstv %s188
        %v192 = vadd.s32 %v191, %v190
        %vm193 = vcmp.lt.s32.totalorder %v192, 8
        %v194 = vsel %vm193, %v186, 0.0
        %v195 = vld [vmem:[#allocation2] sm:$0x1]
        %vm196 = vcmask 7168
        %v197 = vsel %vm196, %v194, 0.0
        %198 = vadd.xlane.f32.xlu0 %v197
        %v199 = vpop.xlane.xlu0 %198
        %v200 = vrot.slane %v199, 4
        %v201 = vadd.f32 %v199, %v200
        %v202 = vrot.slane %v201, 2
        %v203 = vadd.f32 %v201, %v202
        %v204 = vrot.slane %v203, 1
        %v205 = vadd.f32 %v203, %v204
        %s206 = vtos %v205
        %v207 = vstv %s206
        %v208 = vadd.f32 %v195, %v207
        %vm209 = vcmask 0
        %210 = vst.msk [vmem:[#allocation2] sm:$0x1] %vm209, %v208
        // Predicated region
        $region33: #{tpu_custom_call.1} parent=23 // pred_check
          %p211 = pneg %p154
        $region34: #{tpu_custom_call.1} parent=23 // pred_check_branch
          %213 = sbr.rel (%p211) target = $region36
        $region35: #{tpu_custom_call.1} parent=23 // pred_region
          %v214 = vld [vmem:[#allocation2] sm:$0x1]
          %215 = vst.msk [vmem:[%s153] sm:$0x1] %vm209, %v214
        $region36: #{tpu_custom_call.1} parent=23 // pred_fallthru
          _
        %p216 = scmp.lt.s32.totalorder %s19, 1
        %s217 = scalar_select %p216, %s19, 1
        %s218 = scalar_lea.vmem %s1, %s217
        // Predicated region
        $region37: #{tpu_custom_call.1} parent=23 // pred_check
          %p219 = pneg %p77
        $region38: #{tpu_custom_call.1} parent=23 // pred_check_branch
          %221 = sbr.rel (%p219) target = $region40
        $region39: #{tpu_custom_call.1} parent=23 // pred_region
          _
        $region40: #{tpu_custom_call.1} parent=23 // pred_fallthru
          _
      $region24: #{tpu_custom_call.1} parent=5 // pred_fallthru
        _
      %p222 = scmp.le.s32.totalorder 2, %s10
      // Predicated region
      $region41: #{tpu_custom_call.1} parent=5 // pred_check
        %p223 = pneg %p222
      $region42: #{tpu_custom_call.1} parent=5 // pred_check_branch
        %225 = sbr.rel (%p223) target = $region44
      $region43: #{tpu_custom_call.1} parent=5 // pred_region
        %s226 = ssub.s32 %s10, 2
        // Predicated region
        $region45: #{tpu_custom_call.1} parent=43 // pred_check
          %p227 = pneg %p83
        $region46: #{tpu_custom_call.1} parent=43 // pred_check_branch
          %229 = sbr.rel (%p227) target = $region48
        $region47: #{tpu_custom_call.1} parent=43 // pred_region
          %p230 = scmp.lt.s32.totalorder %s21, 1
          %s231 = scalar_select %p230, %s21, 1
          %s232 = scalar_lea.vmem %s1, %s231
        $region48: #{tpu_custom_call.1} parent=43 // pred_fallthru
          _
      $region44: #{tpu_custom_call.1} parent=5 // pred_fallthru
        _
    $region6: #{tpu_custom_call.1} parent=1 // loop_footer
      %s14 = sadd.s32 1, %s10
    $region7: #{tpu_custom_call.1} parent=1 // loop_footer_branch
      %9 = sbr.rel target = $region3
    $region8: #{tpu_custom_call.1} parent=1 // loop_exit
      _
    %233 = vsyncpa [#allocation4], 1
    %s234 = scalar_lea.sflag [#allocation4], 1
    %235 = vsyncpa %s234, 1

</llo_original>
